<compile_context>
chip_gen: v6e
topology: v6e:2x2x1
jax: 0.10.0
libtpu: 0.0.40
codegen_flags: <defaults>
</compile_context>

<pallas_src>
import jax
import jax.numpy as jnp
from jax import lax
from jax.experimental import pallas as pl
from jax.experimental.pallas import tpu as pltpu

EPS = 1e-5  # PyTorch nn.LayerNorm default


def _time_mixing_kernel(x_ref, w_ref, b_ref, o_ref):
    # x_ref: (B, D) block, one flattened (S*C) sample per row (lane-dense).
    x = x_ref[...].astype(jnp.float32)

    # --- LayerNorm over normalized_shape=(S, C): per-row over all D elems ---
    # Two-pass variance for numerical robustness (matches the reference).
    mu = jnp.mean(x, axis=-1, keepdims=True)               # (B, 1)
    xc = x - mu
    var = jnp.mean(xc * xc, axis=-1, keepdims=True)        # (B, 1)
    z = xc * lax.rsqrt(var + EPS)                          # standardized x

    # --- fc1 over the time axis; LN affine + fc1 bias pre-folded into W'/b' ---
    h = jnp.dot(z, w_ref[...], preferred_element_type=jnp.float32)   # (B, D)
    h = jnp.maximum(h + b_ref[...], 0.0)                   # bias + ReLU

    # --- dropout (eval) = identity; pre-norm residual; norm_after = Identity ---
    o_ref[...] = (x + h).astype(o_ref.dtype)


def time_mixing(x, w, b, gamma, beta):
    """x: (B, S, C); w: (S, S) fc1.weight (out, in); b: (S,); gamma, beta: (S, C)."""
    B, S, C = x.shape
    D = S * C

    # Lane-dense flattening: one sample per row of D = S*C columns.
    x2d = x.reshape(B, D)

    # fc1 on the time axis, re-expressed for the flat layout:
    #   h_flat[n, t*C + c] = sum_s W[t, s] * xn_flat[n, s*C + c]
    # i.e. xn_flat @ kron(W^T, I_C).  The LayerNorm affine (gamma, beta) and
    # the fc1 bias are folded in once on the host side:
    #   xn_flat = z * gamma_flat + beta_flat
    #   h_flat  = z @ (diag(gamma_flat) @ W_exp) + (beta_flat @ W_exp + b_rep)
    w_exp = jnp.kron(w.T, jnp.eye(C, dtype=w.dtype))        # (D, D)
    g_flat = gamma.reshape(D).astype(jnp.float32)
    bt_flat = beta.reshape(D).astype(jnp.float32)
    b_rep = jnp.repeat(b, C).astype(jnp.float32)            # (D,)

    w_fused = (g_flat[:, None] * w_exp).astype(jnp.float32)            # (D, D)
    b_fused = (bt_flat @ w_exp + b_rep).reshape(1, D).astype(jnp.float32)

    cost = pl.CostEstimate(
        flops=2 * B * D * D + 8 * B * D,
        transcendentals=B,
        bytes_accessed=(2 * B * D + D * D + D) * 4,
    )

    out2d = pl.pallas_call(
        _time_mixing_kernel,
        out_shape=jax.ShapeDtypeStruct((B, D), x.dtype),
        grid_spec=pltpu.PrefetchScalarGridSpec(
            num_scalar_prefetch=0,
            grid=(1,),  # whole batch in one step: no per-step grid overhead
            in_specs=[
                pl.BlockSpec((B, D), lambda i: (0, 0)),    # x rows (full batch)
                pl.BlockSpec((D, D), lambda i: (0, 0)),    # fused fc1 weight
                pl.BlockSpec((1, D), lambda i: (0, 0)),    # fused bias
            ],
            out_specs=pl.BlockSpec((B, D), lambda i: (0, 0)),
        ),
        compiler_params=pltpu.CompilerParams(
            dimension_semantics=("arbitrary",)),
        cost_estimate=cost,
    )(x2d, w_fused, b_fused)

    return out2d.reshape(B, S, C)


def time_mixing_ref(x, w, b, gamma, beta):
    """Pure-JAX reference mirroring the PyTorch forward."""
    mu = jnp.mean(x, axis=(1, 2), keepdims=True)
    var = jnp.mean((x - mu) ** 2, axis=(1, 2), keepdims=True)
    xn = (x - mu) / jnp.sqrt(var + EPS) * gamma[None] + beta[None]
    xt = jnp.transpose(xn, (0, 2, 1))                       # (B, C, S)
    h = jnp.einsum("bcs,ts->bct", xt, w) + b[None, None, :]
    h = jnp.maximum(h, 0.0)
    return x + jnp.transpose(h, (0, 2, 1))


if __name__ == "__main__":
    B, S, C = 64, 16, 8  # batch, sequence_length, input_dim
    key = jax.random.PRNGKey(0)
    kx, kw, kb, kg, kbe = jax.random.split(key, 5)

    x = jax.random.normal(kx, (B, S, C), dtype=jnp.float32)
    # Deterministic synthetic parameters (not a checkpoint load).
    bound = 1.0 / jnp.sqrt(S)
    w = jax.random.uniform(kw, (S, S), minval=-bound, maxval=bound,
                           dtype=jnp.float32)               # fc1.weight (out, in)
    b = jax.random.uniform(kb, (S,), minval=-bound, maxval=bound,
                           dtype=jnp.float32)               # fc1.bias
    gamma = jnp.ones((S, C), jnp.float32) + 0.01 * jax.random.normal(kg, (S, C))
    beta = 0.01 * jax.random.normal(kbe, (S, C), dtype=jnp.float32)

    out = time_mixing(x, w, b, gamma, beta)
    out = jax.block_until_ready(out)

    ref = time_mixing_ref(x, w, b, gamma, beta)
    assert out.shape == ref.shape
    assert jnp.allclose(out, ref, atol=1e-4, rtol=1e-4), "mismatch vs reference"

    print("KERNEL_OK")
</pallas_src>

<mosaic_0001>
module attributes {stable_mosaic.version = 11 : i64} {
  func.func @_time_mixing_kernel(%arg0: i32, %arg1: memref<64x128xf32, #tpu.memory_space<vmem>>, %arg2: memref<128x128xf32, #tpu.memory_space<vmem>>, %arg3: memref<1x128xf32, #tpu.memory_space<vmem>>, %arg4: memref<64x128xf32, #tpu.memory_space<vmem>>) attributes {dimension_semantics = [#tpu.dimension_semantics<arbitrary>], iteration_bounds = array<i64: 1>, scalar_prefetch = 0 : i64, scratch_operands = 0 : i64, tpu.core_type = #tpu.core_type<tc>, window_params = [{pipeline_mode = #tpu.pipeline_mode<synchronous>, transform_indices = @transform_0, window_bounds = array<i64: 64, 128>}, {pipeline_mode = #tpu.pipeline_mode<synchronous>, transform_indices = @transform_1, window_bounds = array<i64: 128, 128>}, {pipeline_mode = #tpu.pipeline_mode<synchronous>, transform_indices = @transform_2, window_bounds = array<i64: 1, 128>}, {pipeline_mode = #tpu.pipeline_mode<synchronous>, transform_indices = @transform_3, window_bounds = array<i64: 64, 128>}]} {
    %c0 = arith.constant 0 : index
    %c0_0 = arith.constant 0 : index
    %0 = vector.load %arg1[%c0, %c0_0] : memref<64x128xf32, #tpu.memory_space<vmem>>, vector<64x128xf32>
    %cst = arith.constant dense<0.000000e+00> : vector<64xf32>
    %1 = vector.multi_reduction <add>, %0, %cst [1] : vector<64x128xf32> to vector<64xf32>
    %2 = vector.shape_cast %1 : vector<64xf32> to vector<64x1xf32>
    %cst_1 = arith.constant 1.280000e+02 : f32
    %3 = vector.broadcast %cst_1 : f32 to vector<64x1xf32>
    %4 = arith.divf %2, %3 : vector<64x1xf32>
    %5 = vector.broadcast %4 : vector<64x1xf32> to vector<64x128xf32>
    %6 = arith.subf %0, %5 : vector<64x128xf32>
    %7 = arith.mulf %6, %6 : vector<64x128xf32>
    %cst_2 = arith.constant dense<0.000000e+00> : vector<64xf32>
    %8 = vector.multi_reduction <add>, %7, %cst_2 [1] : vector<64x128xf32> to vector<64xf32>
    %9 = vector.shape_cast %8 : vector<64xf32> to vector<64x1xf32>
    %cst_3 = arith.constant 1.280000e+02 : f32
    %10 = vector.broadcast %cst_3 : f32 to vector<64x1xf32>
    %11 = arith.divf %9, %10 : vector<64x1xf32>
    %cst_4 = arith.constant 9.99999974E-6 : f32
    %12 = vector.broadcast %cst_4 : f32 to vector<64x1xf32>
    %13 = arith.addf %11, %12 : vector<64x1xf32>
    %14 = math.rsqrt %13 : vector<64x1xf32>
    %15 = vector.broadcast %14 : vector<64x1xf32> to vector<64x128xf32>
    %16 = arith.mulf %6, %15 : vector<64x128xf32>
    %c0_5 = arith.constant 0 : index
    %c0_6 = arith.constant 0 : index
    %17 = vector.load %arg2[%c0_5, %c0_6] : memref<128x128xf32, #tpu.memory_space<vmem>>, vector<128x128xf32>
    %cst_7 = arith.constant dense<0.000000e+00> : vector<64x128xf32>
    %18 = tpu.matmul %16, %17, %cst_7 {dimension_numbers = #tpu.dot_dimension_numbers<[1], [0], [0], [1], [0, 0, 1, 1], [], []>} : vector<64x128xf32>, vector<128x128xf32>, vector<64x128xf32> -> vector<64x128xf32>
    %c0_8 = arith.constant 0 : index
    %c0_9 = arith.constant 0 : index
    %19 = vector.load %arg3[%c0_8, %c0_9] : memref<1x128xf32, #tpu.memory_space<vmem>>, vector<1x128xf32>
    %20 = vector.broadcast %19 : vector<1x128xf32> to vector<64x128xf32>
    %21 = arith.addf %18, %20 : vector<64x128xf32>
    %cst_10 = arith.constant 0.000000e+00 : f32
    %22 = vector.broadcast %cst_10 : f32 to vector<64x128xf32>
    %23 = arith.maximumf %21, %22 : vector<64x128xf32>
    %24 = arith.addf %0, %23 : vector<64x128xf32>
    %c0_11 = arith.constant 0 : index
    %c0_12 = arith.constant 0 : index
    %25 = vector.load %arg4[%c0_11, %c0_12] : memref<64x128xf32, #tpu.memory_space<vmem>>, vector<64x128xf32>
    tpu.vector_store %arg4[%c0_11, %c0_12], %24 {strides = array<i32>} : memref<64x128xf32, #tpu.memory_space<vmem>>, vector<64x128xf32>,
    return
  }
  func.func @transform_0(%arg0: i32) -> (i32, i32) {
    %c0_i32 = arith.constant 0 : i32
    %c0_i32_0 = arith.constant 0 : i32
    %c0_i32_1 = arith.constant 0 : i32
    return %c0_i32, %c0_i32_0 : i32, i32
  }
  func.func @transform_1(%arg0: i32) -> (i32, i32) {
    %c0_i32 = arith.constant 0 : i32
    %c0_i32_0 = arith.constant 0 : i32
    %c0_i32_1 = arith.constant 0 : i32
    return %c0_i32, %c0_i32_0 : i32, i32
  }
  func.func @transform_2(%arg0: i32) -> (i32, i32) {
    %c0_i32 = arith.constant 0 : i32
    %c0_i32_0 = arith.constant 0 : i32
    %c0_i32_1 = arith.constant 0 : i32
    return %c0_i32, %c0_i32_0 : i32, i32
  }
  func.func @transform_3(%arg0: i32) -> (i32, i32) {
    %c0_i32 = arith.constant 0 : i32
    %c0_i32_0 = arith.constant 0 : i32
    %c0_i32_1 = arith.constant 0 : i32
    return %c0_i32, %c0_i32_0 : i32, i32
  }
}

</mosaic_0001>

<llo_original>
// kernel: tpu_custom_call.1
$region0: #{tpu_custom_call.1}
  #allocation0 [shape = 'u32[]', space=smem, size = 0x4, offset = 0x4, fixed_abs, tag = 'smem constant byte address 0x4 - core index']
  #allocation1 [shape = 'u32[144,128]{1,0:T(1,128)}', space=vmem, size = 0x12000, scoped, tag = 'internal scratch']
  %s0 = inlined_call_operand.hbm [shape: f32[64,128], index: 0, kind: input, shape index: {}]
  %s1 = inlined_call_operand.hbm [shape: f32[128,128], index: 1, kind: input, shape index: {}]
  %s2 = inlined_call_operand.vmem [shape: f32[1,128], index: 2, kind: input, shape index: {}]
  %s3 = inlined_call_operand.hbm [shape: f32[64,128], index: 3, kind: output, shape index: {}]
  %s4 = sld [smem:[#allocation0]]
  $region30: #{tpu_custom_call.1} parent=0
    _
  %s6 = ssub.s32 1, %s4
  %s7 = scalar_select 0, %s6, %s4
  $region1: #{tpu_custom_call.1} parent=0
    #allocation2 [shape = 'u8[32768]{0}', space=vmem, size = 0x8000, scoped, tag = 'input window, operand 0, single buffered']
    #allocation3 [shape = 's32[1]{0}', space=sflag, size = 0x4, scoped, tag = 'scoped memory for tpu_custom_call.1']
    #allocation4 [shape = 's32[1]{0}', space=sflag, size = 0x4, scoped, tag = 'scoped memory for tpu_custom_call.1']
    #allocation5 [shape = 'u8[65536]{0}', space=vmem, size = 0x10000, scoped, tag = 'input window, operand 1, single buffered']
    #allocation6 [shape = 's32[1]{0}', space=sflag, size = 0x4, scoped, tag = 'scoped memory for tpu_custom_call.1']
    #allocation7 [shape = 'u8[32768]{0}', space=vmem, size = 0x8000, scoped, tag = 'output window, operand 0, single buffered']
    %8 = vsyncpa [#allocation3], 0
    %9 = vsyncpa [#allocation6], 0
    %10 = vsyncpa [#allocation4], 0
    // Predicated region
    $region2: #{tpu_custom_call.1} parent=1 // pred_check
      _
    $region3: #{tpu_custom_call.1} parent=1 // pred_check_branch
      %12 = sbr.rel (0) target = $region5
    $region4: #{tpu_custom_call.1} parent=1 // pred_region
      %s14 = ssub.s32 1024, 1024
      %15 = vsyncadd [#allocation3], %s14
      %s16 = sshll.u32 [#allocation2], 4
      %s17 = int_to_ptr.vmem [resolvable:$true] %s16
      %22 = dma.hbm_to_vmem [thread:$0]  %s0, 1024, %s17, [#allocation3], 128, 128, 8
    $region5: #{tpu_custom_call.1} parent=1 // pred_fallthru
      _
    // Predicated region
    $region6: #{tpu_custom_call.1} parent=1 // pred_check
      _
    $region7: #{tpu_custom_call.1} parent=1 // pred_check_branch
      %24 = sbr.rel (0) target = $region9
    $region8: #{tpu_custom_call.1} parent=1 // pred_region
      %s26 = ssub.s32 2048, 2048
      %27 = vsyncadd [#allocation6], %s26
      %s28 = sshll.u32 [#allocation5], 4
      %s29 = int_to_ptr.vmem [resolvable:$true] %s28
      %34 = dma.hbm_to_vmem [thread:$0]  %s1, 2048, %s29, [#allocation6], 128, 128, 8
    $region9: #{tpu_custom_call.1} parent=1 // pred_fallthru
      _
    // Predicated region
    $region10: #{tpu_custom_call.1} parent=1 // pred_check
      _
    $region11: #{tpu_custom_call.1} parent=1 // pred_check_branch
      %36 = sbr.rel (0) target = $region13
    $region12: #{tpu_custom_call.1} parent=1 // pred_region
      _
    $region13: #{tpu_custom_call.1} parent=1 // pred_fallthru
      _
    // Predicated region
    $region14: #{tpu_custom_call.1} parent=1 // pred_check
      _
    $region15: #{tpu_custom_call.1} parent=1 // pred_check_branch
      %38 = sbr.rel (0) target = $region17
    $region16: #{tpu_custom_call.1} parent=1 // pred_region
      %39 = dma.done [#allocation3], 1024
    $region17: #{tpu_custom_call.1} parent=1 // pred_fallthru
      _
    // Predicated region
    $region18: #{tpu_custom_call.1} parent=1 // pred_check
      _
    $region19: #{tpu_custom_call.1} parent=1 // pred_check_branch
      %41 = sbr.rel (0) target = $region21
    $region20: #{tpu_custom_call.1} parent=1 // pred_region
      %42 = dma.done [#allocation6], 2048
    $region21: #{tpu_custom_call.1} parent=1 // pred_fallthru
      _
    %v43 = vld [vmem:[#allocation2] sm:$0xff]
    %v44 = vld [vmem:[#allocation2 + $0x8] sm:$0xff]
    %v45 = vld [vmem:[#allocation2 + $0x10] sm:$0xff]
    %v46 = vld [vmem:[#allocation2 + $0x18] sm:$0xff]
    %v47 = vld [vmem:[#allocation2 + $0x20] sm:$0xff]
    %v48 = vld [vmem:[#allocation2 + $0x28] sm:$0xff]
    %v49 = vld [vmem:[#allocation2 + $0x30] sm:$0xff]
    %v50 = vld [vmem:[#allocation2 + $0x38] sm:$0xff]
    %51 = vadd.xlane.f32.xlu0 %v43
    %v52 = vpop.xlane.xlu0 %51
    %53 = vadd.xlane.f32.xlu0 %v44
    %v54 = vpop.xlane.xlu0 %53
    %55 = vadd.xlane.f32.xlu0 %v45
    %v56 = vpop.xlane.xlu0 %55
    %57 = vadd.xlane.f32.xlu0 %v46
    %v58 = vpop.xlane.xlu0 %57
    %59 = vadd.xlane.f32.xlu0 %v47
    %v60 = vpop.xlane.xlu0 %59
    %61 = vadd.xlane.f32.xlu0 %v48
    %v62 = vpop.xlane.xlu0 %61
    %63 = vadd.xlane.f32.xlu0 %v49
    %v64 = vpop.xlane.xlu0 %63
    %65 = vadd.xlane.f32.xlu0 %v50
    %v66 = vpop.xlane.xlu0 %65
    %v67 = vrcp.pop 128.0
    %v68 = vmul.f32 %v52, %v67
    %v69 = vmul.f32 %v54, %v67
    %v70 = vmul.f32 %v56, %v67
    %v71 = vmul.f32 %v58, %v67
    %v72 = vmul.f32 %v60, %v67
    %v73 = vmul.f32 %v62, %v67
    %v74 = vmul.f32 %v64, %v67
    %v75 = vmul.f32 %v66, %v67
    %v76 = vsub.f32 %v43, %v68
    %v77 = vsub.f32 %v44, %v69
    %v78 = vsub.f32 %v45, %v70
    %v79 = vsub.f32 %v46, %v71
    %v80 = vsub.f32 %v47, %v72
    %v81 = vsub.f32 %v48, %v73
    %v82 = vsub.f32 %v49, %v74
    %v83 = vsub.f32 %v50, %v75
    %v84 = vmul.f32 %v76, %v76
    %v85 = vmul.f32 %v77, %v77
    %v86 = vmul.f32 %v78, %v78
    %v87 = vmul.f32 %v79, %v79
    %v88 = vmul.f32 %v80, %v80
    %v89 = vmul.f32 %v81, %v81
    %v90 = vmul.f32 %v82, %v82
    %v91 = vmul.f32 %v83, %v83
    %92 = vadd.xlane.f32.xlu0 %v84
    %v93 = vpop.xlane.xlu0 %92
    %94 = vadd.xlane.f32.xlu0 %v85
    %v95 = vpop.xlane.xlu0 %94
    %96 = vadd.xlane.f32.xlu0 %v86
    %v97 = vpop.xlane.xlu0 %96
    %98 = vadd.xlane.f32.xlu0 %v87
    %v99 = vpop.xlane.xlu0 %98
    %100 = vadd.xlane.f32.xlu0 %v88
    %v101 = vpop.xlane.xlu0 %100
    %102 = vadd.xlane.f32.xlu0 %v89
    %v103 = vpop.xlane.xlu0 %102
    %104 = vadd.xlane.f32.xlu0 %v90
    %v105 = vpop.xlane.xlu0 %104
    %106 = vadd.xlane.f32.xlu0 %v91
    %v107 = vpop.xlane.xlu0 %106
    %v108 = vmul.f32 %v93, %v67
    %v109 = vmul.f32 %v95, %v67
    %v110 = vmul.f32 %v97, %v67
    %v111 = vmul.f32 %v99, %v67
    %v112 = vmul.f32 %v101, %v67
    %v113 = vmul.f32 %v103, %v67
    %v114 = vmul.f32 %v105, %v67
    %v115 = vmul.f32 %v107, %v67
    %v116 = vadd.f32 %v108, 1e-05
    %v117 = vadd.f32 %v109, 1e-05
    %v118 = vadd.f32 %v110, 1e-05
    %v119 = vadd.f32 %v111, 1e-05
    %v120 = vadd.f32 %v112, 1e-05
    %v121 = vadd.f32 %v113, 1e-05
    %v122 = vadd.f32 %v114, 1e-05
    %v123 = vadd.f32 %v115, 1e-05
    %v124 = vrsqrt.pop %v116
    %v125 = vrsqrt.pop %v117
    %v126 = vrsqrt.pop %v118
    %v127 = vrsqrt.pop %v119
    %v128 = vrsqrt.pop %v120
    %v129 = vrsqrt.pop %v121
    %v130 = vrsqrt.pop %v122
    %v131 = vrsqrt.pop %v123
    %v132 = vmul.f32 %v76, %v124
    %v133 = vmul.f32 %v77, %v125
    %v134 = vmul.f32 %v78, %v126
    %v135 = vmul.f32 %v79, %v127
    %v136 = vmul.f32 %v80, %v128
    %v137 = vmul.f32 %v81, %v129
    %v138 = vmul.f32 %v82, %v130
    %v139 = vmul.f32 %v83, %v131
    %v140 = vld [vmem:[#allocation5] sm:$0xff]
    %v141 = vld [vmem:[#allocation5 + $0x8] sm:$0xff]
    %v142 = vld [vmem:[#allocation5 + $0x10] sm:$0xff]
    %v143 = vld [vmem:[#allocation5 + $0x18] sm:$0xff]
    %v144 = vld [vmem:[#allocation5 + $0x20] sm:$0xff]
    %v145 = vld [vmem:[#allocation5 + $0x28] sm:$0xff]
    %v146 = vld [vmem:[#allocation5 + $0x30] sm:$0xff]
    %v147 = vld [vmem:[#allocation5 + $0x38] sm:$0xff]
    %v148 = vld [vmem:[#allocation5 + $0x40] sm:$0xff]
    %v149 = vld [vmem:[#allocation5 + $0x48] sm:$0xff]
    %v150 = vld [vmem:[#allocation5 + $0x50] sm:$0xff]
    %v151 = vld [vmem:[#allocation5 + $0x58] sm:$0xff]
    %v152 = vld [vmem:[#allocation5 + $0x60] sm:$0xff]
    %v153 = vld [vmem:[#allocation5 + $0x68] sm:$0xff]
    %v154 = vld [vmem:[#allocation5 + $0x70] sm:$0xff]
    %v155 = vld [vmem:[#allocation5 + $0x78] sm:$0xff]
    %v156 = vld [vmem:[%s2] sm:$0x1]
    %v158 = vlaneseq
    %v159 = vshrl.u32 %v158, 7
    %v160 = vsub.s32 0, %v159
    %v161 = vrot.slane %v156, %v160
    %163 = vmatprep.subr.mxu0 0.0
    %164 = vmatpush1.msra.mxu0 %v155
    %165 = vmatprep.subr.mxu0 0.0
    %166 = vmatpush1.msra.mxu0 %v154
    %167 = vmatprep.subr.mxu0 0.0
    %168 = vmatpush1.msra.mxu0 %v153
    %169 = vmatprep.subr.mxu0 0.0
    %170 = vmatpush1.msra.mxu0 %v152
    %171 = vmatprep.subr.mxu0 0.0
    %172 = vmatpush1.msra.mxu0 %v151
    %173 = vmatprep.subr.mxu0 0.0
    %174 = vmatpush1.msra.mxu0 %v150
    %175 = vmatprep.subr.mxu0 0.0
    %176 = vmatpush1.msra.mxu0 %v149
    %177 = vmatprep.subr.mxu0 0.0
    %178 = vmatpush1.msra.mxu0 %v148
    %179 = vmatprep.subr.mxu0 0.0
    %180 = vmatpush1.msra.mxu0 %v147
    %181 = vmatprep.subr.mxu0 0.0
    %182 = vmatpush1.msra.mxu0 %v146
    %183 = vmatprep.subr.mxu0 0.0
    %184 = vmatpush1.msra.mxu0 %v145
    %185 = vmatprep.subr.mxu0 0.0
    %186 = vmatpush1.msra.mxu0 %v144
    %187 = vmatprep.subr.mxu0 0.0
    %188 = vmatpush1.msra.mxu0 %v143
    %189 = vmatprep.subr.mxu0 0.0
    %190 = vmatpush1.msra.mxu0 %v142
    %191 = vmatprep.subr.mxu0 0.0
    %192 = vmatpush1.msra.mxu0 %v141
    %193 = vmatprep.subr.mxu0 0.0
    %194 = vmatpush1.msra.mxu0 %v140
    %195 = vmatprep.subr.mxu0 0.0
    %196 = vmatpush2.msra.mxu0 0.0
    %197 = vmatprep.subr.mxu0 0.0
    %198 = vmatpush2.msra.mxu0 0.0
    %199 = vmatprep.subr.mxu0 0.0
    %200 = vmatpush2.msra.mxu0 0.0
    %201 = vmatprep.subr.mxu0 0.0
    %202 = vmatpush2.msra.mxu0 0.0
    %203 = vmatprep.subr.mxu0 0.0
    %204 = vmatpush2.msra.mxu0 0.0
    %205 = vmatprep.subr.mxu0 0.0
    %206 = vmatpush2.msra.mxu0 0.0
    %207 = vmatprep.subr.mxu0 0.0
    %208 = vmatpush2.msra.mxu0 0.0
    %209 = vmatprep.subr.mxu0 0.0
    %210 = vmatpush2.msra.mxu0 0.0
    %211 = vmatprep.subr.mxu0 0.0
    %212 = vmatpush2.msra.mxu0 0.0
    %213 = vmatprep.subr.mxu0 0.0
    %214 = vmatpush2.msra.mxu0 0.0
    %215 = vmatprep.subr.mxu0 0.0
    %216 = vmatpush2.msra.mxu0 0.0
    %217 = vmatprep.subr.mxu0 0.0
    %218 = vmatpush2.msra.mxu0 0.0
    %219 = vmatprep.subr.mxu0 0.0
    %220 = vmatpush2.msra.mxu0 0.0
    %221 = vmatprep.subr.mxu0 0.0
    %222 = vmatpush2.msra.mxu0 0.0
    %223 = vmatprep.subr.mxu0 0.0
    %224 = vmatpush2.msra.mxu0 0.0
    %225 = vmatprep.subr.mxu0 0.0
    %226 = vmatpush2.msra.mxu0 0.0
    %227 = vmatprep.mubr.f32.mxu0 0.0
    %228 = vmatmul.mubr.f32.gmra.mxu0 %v132
    %v229 = vpop.f32.mrf.mxu0
    %v230 = vadd.f32 %v161, %v229
    %v231 = vpop.f32.mrf.mxu0
    %232 = vmatprep.mubr.f32.mxu0 0.0
    %233 = vmatmul.mubr.f32.gmra.mxu0 %v133
    %v234 = vpop.f32.mrf.mxu0
    %v235 = vadd.f32 %v161, %v234
    %v236 = vpop.f32.mrf.mxu0
    %237 = vmatprep.mubr.f32.mxu0 0.0
    %238 = vmatmul.mubr.f32.gmra.mxu0 %v134
    %v239 = vpop.f32.mrf.mxu0
    %v240 = vadd.f32 %v161, %v239
    %v241 = vpop.f32.mrf.mxu0
    %242 = vmatprep.mubr.f32.mxu0 0.0
    %243 = vmatmul.mubr.f32.gmra.mxu0 %v135
    %v244 = vpop.f32.mrf.mxu0
    %v245 = vadd.f32 %v161, %v244
    %v246 = vpop.f32.mrf.mxu0
    %247 = vmatprep.mubr.f32.mxu0 0.0
    %248 = vmatmul.mubr.f32.gmra.mxu0 %v136
    %v249 = vpop.f32.mrf.mxu0
    %v250 = vadd.f32 %v161, %v249
    %v251 = vpop.f32.mrf.mxu0
    %252 = vmatprep.mubr.f32.mxu0 0.0
    %253 = vmatmul.mubr.f32.gmra.mxu0 %v137
    %v254 = vpop.f32.mrf.mxu0
    %v255 = vadd.f32 %v161, %v254
    %v256 = vpop.f32.mrf.mxu0
    %257 = vmatprep.mubr.f32.mxu0 0.0
    %258 = vmatmul.mubr.f32.gmra.mxu0 %v138
    %v259 = vpop.f32.mrf.mxu0
    %v260 = vadd.f32 %v161, %v259
    %v261 = vpop.f32.mrf.mxu0
    %262 = vmatprep.mubr.f32.mxu0 0.0
    %263 = vmatmul.mubr.f32.gmra.mxu0 %v139
    %v264 = vpop.f32.mrf.mxu0
    %v265 = vadd.f32 %v161, %v264
    %v266 = vpop.f32.mrf.mxu0
    %267 = vdwg.mxu0
    %v268 = vmax.f32 %v230, 0.0
    %v269 = vmax.f32 %v235, 0.0
    %v270 = vmax.f32 %v240, 0.0
    %v271 = vmax.f32 %v245, 0.0
    %v272 = vmax.f32 %v250, 0.0
    %v273 = vmax.f32 %v255, 0.0
    %v274 = vmax.f32 %v260, 0.0
    %v275 = vmax.f32 %v265, 0.0
    %v276 = vadd.f32 %v43, %v268
    %v277 = vadd.f32 %v44, %v269
    %v278 = vadd.f32 %v45, %v270
    %v279 = vadd.f32 %v46, %v271
    %v280 = vadd.f32 %v47, %v272
    %v281 = vadd.f32 %v48, %v273
    %v282 = vadd.f32 %v49, %v274
    %v283 = vadd.f32 %v50, %v275
    %284 = vst [vmem:[#allocation7] sm:$0xff] %v276
    %285 = vst [vmem:[#allocation7 + $0x8] sm:$0xff] %v277
    %286 = vst [vmem:[#allocation7 + $0x10] sm:$0xff] %v278
    %287 = vst [vmem:[#allocation7 + $0x18] sm:$0xff] %v279
    %288 = vst [vmem:[#allocation7 + $0x20] sm:$0xff] %v280
    %289 = vst [vmem:[#allocation7 + $0x28] sm:$0xff] %v281
    %290 = vst [vmem:[#allocation7 + $0x30] sm:$0xff] %v282
    %291 = vst [vmem:[#allocation7 + $0x38] sm:$0xff] %v283
    // Predicated region
    $region22: #{tpu_custom_call.1} parent=1 // pred_check
      _
    $region23: #{tpu_custom_call.1} parent=1 // pred_check_branch
      %293 = sbr.rel (0) target = $region25
    $region24: #{tpu_custom_call.1} parent=1 // pred_region
      %s295 = ssub.s32 1024, 1024
      %296 = vsyncadd [#allocation4], %s295
      %s297 = sshll.u32 [#allocation7], 4
      %s298 = int_to_ptr.vmem [resolvable:$true] %s297
      %303 = dma.vmem_to_hbm [thread:$0]  %s298, 1024, %s3, [#allocation4], 128, 128, 8
    $region25: #{tpu_custom_call.1} parent=1 // pred_fallthru
      _
    // Predicated region
    $region26: #{tpu_custom_call.1} parent=1 // pred_check
      _
    $region27: #{tpu_custom_call.1} parent=1 // pred_check_branch
      %305 = sbr.rel (0) target = $region29
    $region28: #{tpu_custom_call.1} parent=1 // pred_region
      %306 = dma.done [#allocation4], 1024
    $region29: #{tpu_custom_call.1} parent=1 // pred_fallthru
      _
    %307 = vsyncpa [#allocation3], 1
    %308 = vsyncpa [#allocation6], 1
    %309 = vsyncpa [#allocation4], 1

</llo_original>
